<compile_context>
chip_gen: v7x
topology: tpu7x:2x2x1
jax: 0.10.0
libtpu: 0.0.40
codegen_flags: <defaults>
</compile_context>

<pallas_src>
import jax
import jax.numpy as jnp
from jax.experimental import pallas as pl
from jax.experimental.pallas import tpu as pltpu
import numpy as np

# ---- problem sizes (small, synthetic) ----
B = 4            # graphs per pallas_call
N = 8            # sentence (unit==1) nodes per graph
IN_DIM = 32
OUT_DIM = 32
FEAT_EMBED = 16
NEG_SLOPE = 0.01   # F.leaky_relu default
BN = B * N


def sgat_kernel(h_ref, cos_ref, mask_ref, waug_ref, vbd_ref, out_ref):
    # (1) One augmented MXU matmul over all B*N rows:
    #       cols [0:OUT)  -> z = fc(h)
    #       col  OUT      -> a_src . z   (per-node source attention score)
    #       col  OUT+1    -> a_dst . z   (per-node destination attention score)
    za = jnp.dot(h_ref[...], waug_ref[...], preferred_element_type=jnp.float32)
    z = za[:, :OUT_DIM]                         # [BN, OUT]
    s_src = za[:, OUT_DIM:OUT_DIM + 1]          # [BN, 1]
    s_dst = za[:, OUT_DIM + 1:OUT_DIM + 2]      # [BN, 1]

    # (2) Per-edge feature score on the MXU: cos is [BN, N*FEAT] (lane-dense bf16),
    #     vbd is the block-diagonal folding of feat_fc + a_feat, so the result is
    #     already score_feat[dst, src] over the whole B*N x B*N edge space.
    score_feat = jnp.dot(cos_ref[...], vbd_ref[...],
                         preferred_element_type=jnp.float32)       # [BN, BN]

    # (3) e[dst, src] = leaky_relu(a_src.z_src + a_dst.z_dst + a_feat.dfeat)
    e = s_dst + s_src.reshape(1, BN) + score_feat
    e = jnp.where(e >= 0, e, NEG_SLOPE * e)

    # (4) Masked softmax over incoming edges (src axis).  The mask is the
    #     block-diagonal embedding of each graph's adjacency, so cross-graph
    #     pairs never contribute.
    mask = mask_ref[...]
    e_m = jnp.where(mask > 0, e, jnp.float32(-1e30))
    m = jnp.max(e_m, axis=1, keepdims=True)
    p = jnp.where(mask > 0, jnp.exp(e_m - m), jnp.float32(0.0))
    denom = jnp.sum(p, axis=1, keepdims=True)
    # eps guard: an isolated destination node yields a zero row instead of NaN.
    inv = pl.reciprocal(jnp.maximum(denom, jnp.float32(1e-20)), approx=True)
    alpha = p * inv

    # (5) sh[dst] = sum_src alpha[dst, src] * z[src] -- one [BN,BN]x[BN,OUT] matmul.
    out_ref[...] = jnp.dot(alpha, z, preferred_element_type=jnp.float32)


def sgat_forward(h, cosineembed, adj_mask, w_fc, w_feat, w_attn):
    """h: [B, N, IN], cosineembed: [B, N, N, FEAT], adj_mask: [B, N, N] in {0,1},
    w_fc: [IN, OUT] (pre-transposed), w_feat: [FEAT, OUT] (pre-transposed),
    w_attn: [3*OUT] split as [a_src | a_dst | a_feat]."""
    a_src = w_attn[0 * OUT_DIM:1 * OUT_DIM]
    a_dst = w_attn[1 * OUT_DIM:2 * OUT_DIM]
    a_feat = w_attn[2 * OUT_DIM:3 * OUT_DIM]

    # Fold the narrow attention projections into the fc weight (exact algebra):
    #   z = h @ w_fc ; a_src.z = h @ (w_fc a_src) ; a_dst.z = h @ (w_fc a_dst)
    w_aug = jnp.concatenate(
        [w_fc, (w_fc @ a_src)[:, None], (w_fc @ a_dst)[:, None]], axis=1)

    # Fold feat_fc + a_feat into one vector and lay it out block-diagonally per
    # source node, so score_feat = cos2 @ vbd lands directly in [dst, src] layout.
    v_feat = w_feat @ a_feat                                          # [FEAT]
    vbd_one = jnp.einsum("f,st->sft", v_feat,
                         jnp.eye(N, dtype=v_feat.dtype))
    vbd_one = vbd_one.reshape(N * FEAT_EMBED, N)                      # [N*FEAT, N]
    vbd = jnp.tile(vbd_one, (1, B)).astype(jnp.bfloat16)              # [N*FEAT, BN]

    # Flatten the batch: rows are (graph, node); cos rows are lane-dense (128 wide).
    h2 = h.reshape(BN, IN_DIM)
    cos2 = cosineembed.reshape(BN, N * FEAT_EMBED).astype(jnp.bfloat16)

    # Block-diagonal adjacency over the B*N x B*N edge space (cross-graph = 0).
    eye_b = jnp.eye(B, dtype=adj_mask.dtype)
    mask_full = jnp.einsum("bc,bds->bdcs", eye_b, adj_mask).reshape(BN, BN)

    out2 = pl.pallas_call(
        sgat_kernel,
        out_shape=jax.ShapeDtypeStruct((BN, OUT_DIM), jnp.float32),
        grid=(1,),                                                   # single block
        in_specs=[
            pl.BlockSpec((BN, IN_DIM), lambda i: (0, 0)),            # h
            pl.BlockSpec((BN, N * FEAT_EMBED), lambda i: (0, 0)),    # cos (bf16)
            pl.BlockSpec((BN, BN), lambda i: (0, 0)),                # mask
            pl.BlockSpec((IN_DIM, OUT_DIM + 2), lambda i: (0, 0)),   # W_aug
            pl.BlockSpec((N * FEAT_EMBED, BN), lambda i: (0, 0)),    # Vbd (bf16)
        ],
        out_specs=pl.BlockSpec((BN, OUT_DIM), lambda i: (0, 0)),
        compiler_params=pltpu.CompilerParams(
            dimension_semantics=("arbitrary",)),
    )(h2, cos2, mask_full, w_aug, vbd)

    return out2.reshape(B, N, OUT_DIM)


def sgat_reference(h, cosineembed, adj_mask, w_fc, w_feat, w_attn):
    """Pure-JAX reference of the original (unfused) math, batched over graphs."""
    z = h @ w_fc                                               # [B, N, OUT]
    dfeat = jnp.einsum("bdsf,fo->bdso", cosineembed, w_feat)   # [B, dst, src, OUT]
    a_src = w_attn[0 * OUT_DIM:1 * OUT_DIM]
    a_dst = w_attn[1 * OUT_DIM:2 * OUT_DIM]
    a_feat = w_attn[2 * OUT_DIM:3 * OUT_DIM]
    e = (z @ a_dst)[:, :, None] + (z @ a_src)[:, None, :] + dfeat @ a_feat
    e = jnp.where(e >= 0, e, NEG_SLOPE * e)
    e = jnp.where(adj_mask > 0, e, -1e30)
    m = jnp.max(e, axis=2, keepdims=True)
    p = jnp.exp(e - m) * adj_mask
    alpha = p / jnp.sum(p, axis=2, keepdims=True)
    return jnp.einsum("bds,bso->bdo", alpha, z)


if __name__ == "__main__":
    key = jax.random.PRNGKey(0)
    k1, k2, k3, k4, k5 = jax.random.split(key, 5)

    # sentence-node features and per-edge cosine embeddings for B graphs
    h = jax.random.normal(k1, (B, N, IN_DIM), dtype=jnp.float32)
    cosineembed = jax.random.normal(k2, (B, N, N, FEAT_EMBED), dtype=jnp.float32)

    # deterministic adjacency per graph; diagonal guarantees >=1 in-edge per node
    ii = np.arange(N)[:, None]
    jj = np.arange(N)[None, :]
    bb = np.arange(B)[:, None, None]
    adj_mask = jnp.asarray(
        (((ii + jj + bb) % 2 == 0) | (ii == jj)), dtype=jnp.float32)

    # parameters (nn.Linear weights are [out, in]; stored pre-transposed here)
    w_fc = 0.1 * jax.random.normal(k3, (IN_DIM, OUT_DIM), dtype=jnp.float32)
    w_feat = 0.1 * jax.random.normal(k4, (FEAT_EMBED, OUT_DIM), dtype=jnp.float32)
    w_attn = 0.1 * jax.random.normal(k5, (3 * OUT_DIM,), dtype=jnp.float32)

    out = jax.block_until_ready(
        sgat_forward(h, cosineembed, adj_mask, w_fc, w_feat, w_attn))
    ref = sgat_reference(h, cosineembed, adj_mask, w_fc, w_feat, w_attn)

    # bf16 cos/Vbd MXU operands + approx reciprocal -> slightly looser tolerance
    np.testing.assert_allclose(np.asarray(out), np.asarray(ref),
                               rtol=5e-3, atol=5e-3)

    # TODO(synk): DGL's filter_nodes/filter_edges + sparse g.pull have no direct
    # Pallas equivalent; they are modeled as a dense block-diagonal adjacency mask
    # over the sentence sub-graph (exact when every sentence node has an in-edge).
    print("KERNEL_OK")
</pallas_src>

<mosaic_0001>
module attributes {stable_mosaic.version = 11 : i64} {
  func.func @sgat_kernel(%arg0: i32, %arg1: memref<32x32xf32, #tpu.memory_space<vmem>>, %arg2: memref<32x128xbf16, #tpu.memory_space<vmem>>, %arg3: memref<32x32xf32, #tpu.memory_space<vmem>>, %arg4: memref<32x34xf32, #tpu.memory_space<vmem>>, %arg5: memref<128x32xbf16, #tpu.memory_space<vmem>>, %arg6: memref<32x32xf32, #tpu.memory_space<vmem>>) attributes {dimension_semantics = [#tpu.dimension_semantics<arbitrary>], iteration_bounds = array<i64: 1>, scalar_prefetch = 0 : i64, scratch_operands = 0 : i64, tpu.core_type = #tpu.core_type<tc>, window_params = [{pipeline_mode = #tpu.pipeline_mode<synchronous>, transform_indices = @transform_0, window_bounds = array<i64: 32, 32>}, {pipeline_mode = #tpu.pipeline_mode<synchronous>, transform_indices = @transform_1, window_bounds = array<i64: 32, 128>}, {pipeline_mode = #tpu.pipeline_mode<synchronous>, transform_indices = @transform_2, window_bounds = array<i64: 32, 32>}, {pipeline_mode = #tpu.pipeline_mode<synchronous>, transform_indices = @transform_3, window_bounds = array<i64: 32, 34>}, {pipeline_mode = #tpu.pipeline_mode<synchronous>, transform_indices = @transform_4, window_bounds = array<i64: 128, 32>}, {pipeline_mode = #tpu.pipeline_mode<synchronous>, transform_indices = @transform_5, window_bounds = array<i64: 32, 32>}]} {
    %c0 = arith.constant 0 : index
    %c0_0 = arith.constant 0 : index
    %0 = vector.load %arg1[%c0, %c0_0] : memref<32x32xf32, #tpu.memory_space<vmem>>, vector<32x32xf32>
    %c0_1 = arith.constant 0 : index
    %c0_2 = arith.constant 0 : index
    %1 = vector.load %arg4[%c0_1, %c0_2] : memref<32x34xf32, #tpu.memory_space<vmem>>, vector<32x34xf32>
    %cst = arith.constant dense<0.000000e+00> : vector<32x34xf32>
    %2 = tpu.matmul %0, %1, %cst {dimension_numbers = #tpu.dot_dimension_numbers<[1], [0], [0], [1], [0, 0, 1, 1], [], []>} : vector<32x32xf32>, vector<32x34xf32>, vector<32x34xf32> -> vector<32x34xf32>
    %3 = vector.extract_strided_slice %2 {offsets = [0, 0], sizes = [32, 32], strides = [1, 1]} : vector<32x34xf32> to vector<32x32xf32>
    %4 = vector.extract_strided_slice %2 {offsets = [0, 32], sizes = [32, 1], strides = [1, 1]} : vector<32x34xf32> to vector<32x1xf32>
    %5 = vector.extract_strided_slice %2 {offsets = [0, 33], sizes = [32, 1], strides = [1, 1]} : vector<32x34xf32> to vector<32x1xf32>
    %c0_3 = arith.constant 0 : index
    %c0_4 = arith.constant 0 : index
    %6 = vector.load %arg2[%c0_3, %c0_4] : memref<32x128xbf16, #tpu.memory_space<vmem>>, vector<32x128xbf16>
    %c0_5 = arith.constant 0 : index
    %c0_6 = arith.constant 0 : index
    %7 = vector.load %arg5[%c0_5, %c0_6] : memref<128x32xbf16, #tpu.memory_space<vmem>>, vector<128x32xbf16>
    %cst_7 = arith.constant dense<0.000000e+00> : vector<32x32xf32>
    %8 = tpu.matmul %6, %7, %cst_7 {dimension_numbers = #tpu.dot_dimension_numbers<[1], [0], [0], [1], [0, 0, 1, 1], [], []>} : vector<32x128xbf16>, vector<128x32xbf16>, vector<32x32xf32> -> vector<32x32xf32>
    %9 = vector.shape_cast %4 : vector<32x1xf32> to vector<1x32xf32>
    %10 = vector.broadcast %5 : vector<32x1xf32> to vector<32x32xf32>
    %11 = vector.broadcast %9 : vector<1x32xf32> to vector<32x32xf32>
    %12 = arith.addf %10, %11 : vector<32x32xf32>
    %13 = arith.addf %12, %8 : vector<32x32xf32>
    %cst_8 = arith.constant 0.000000e+00 : f32
    %14 = vector.broadcast %cst_8 : f32 to vector<32x32xf32>
    %15 = arith.cmpf oge, %13, %14 : vector<32x32xf32>
    %cst_9 = arith.constant 0.00999999977 : f32
    %16 = vector.broadcast %cst_9 : f32 to vector<32x32xf32>
    %17 = arith.mulf %16, %13 : vector<32x32xf32>
    %18 = arith.select %15, %13, %17 : vector<32x32xi1>, vector<32x32xf32>
    %c0_10 = arith.constant 0 : index
    %c0_11 = arith.constant 0 : index
    %19 = vector.load %arg3[%c0_10, %c0_11] : memref<32x32xf32, #tpu.memory_space<vmem>>, vector<32x32xf32>
    %cst_12 = arith.constant 0.000000e+00 : f32
    %20 = vector.broadcast %cst_12 : f32 to vector<32x32xf32>
    %21 = arith.cmpf ogt, %19, %20 : vector<32x32xf32>
    %cst_13 = arith.constant -1.000000e+30 : f32
    %22 = vector.broadcast %cst_13 : f32 to vector<32x32xf32>
    %23 = arith.select %21, %18, %22 : vector<32x32xi1>, vector<32x32xf32>
    %cst_14 = arith.constant dense<0xFF800000> : vector<32xf32>
    %24 = vector.multi_reduction <maximumf>, %23, %cst_14 [1] : vector<32x32xf32> to vector<32xf32>
    %25 = vector.shape_cast %24 : vector<32xf32> to vector<32x1xf32>
    %cst_15 = arith.constant 0.000000e+00 : f32
    %26 = vector.broadcast %cst_15 : f32 to vector<32x32xf32>
    %27 = arith.cmpf ogt, %19, %26 : vector<32x32xf32>
    %28 = vector.broadcast %25 : vector<32x1xf32> to vector<32x32xf32>
    %29 = arith.subf %23, %28 : vector<32x32xf32>
    %30 = math.exp %29 : vector<32x32xf32>
    %cst_16 = arith.constant 0.000000e+00 : f32
    %31 = vector.broadcast %cst_16 : f32 to vector<32x32xf32>
    %32 = arith.select %27, %30, %31 : vector<32x32xi1>, vector<32x32xf32>
    %cst_17 = arith.constant dense<0.000000e+00> : vector<32xf32>
    %33 = vector.multi_reduction <add>, %32, %cst_17 [1] : vector<32x32xf32> to vector<32xf32>
    %34 = vector.shape_cast %33 : vector<32xf32> to vector<32x1xf32>
    %cst_18 = arith.constant 9.99999968E-21 : f32
    %35 = vector.broadcast %cst_18 : f32 to vector<32x1xf32>
    %36 = arith.maximumf %34, %35 : vector<32x1xf32>
    %37 = tpu.reciprocal %36 {approx = true} : vector<32x1xf32> -> vector<32x1xf32>
    %38 = vector.broadcast %37 : vector<32x1xf32> to vector<32x32xf32>
    %39 = arith.mulf %32, %38 : vector<32x32xf32>
    %cst_19 = arith.constant dense<0.000000e+00> : vector<32x32xf32>
    %40 = tpu.matmul %39, %3, %cst_19 {dimension_numbers = #tpu.dot_dimension_numbers<[1], [0], [0], [1], [0, 0, 1, 1], [], []>} : vector<32x32xf32>, vector<32x32xf32>, vector<32x32xf32> -> vector<32x32xf32>
    %c0_20 = arith.constant 0 : index
    %c0_21 = arith.constant 0 : index
    %41 = vector.load %arg6[%c0_20, %c0_21] : memref<32x32xf32, #tpu.memory_space<vmem>>, vector<32x32xf32>
    tpu.vector_store %arg6[%c0_20, %c0_21], %40 {strides = array<i32>} : memref<32x32xf32, #tpu.memory_space<vmem>>, vector<32x32xf32>,
    return
  }
  func.func @transform_0(%arg0: i32) -> (i32, i32) {
    %c0_i32 = arith.constant 0 : i32
    %c0_i32_0 = arith.constant 0 : i32
    %c0_i32_1 = arith.constant 0 : i32
    return %c0_i32, %c0_i32_0 : i32, i32
  }
  func.func @transform_1(%arg0: i32) -> (i32, i32) {
    %c0_i32 = arith.constant 0 : i32
    %c0_i32_0 = arith.constant 0 : i32
    %c0_i32_1 = arith.constant 0 : i32
    return %c0_i32, %c0_i32_0 : i32, i32
  }
  func.func @transform_2(%arg0: i32) -> (i32, i32) {
    %c0_i32 = arith.constant 0 : i32
    %c0_i32_0 = arith.constant 0 : i32
    %c0_i32_1 = arith.constant 0 : i32
    return %c0_i32, %c0_i32_0 : i32, i32
  }
  func.func @transform_3(%arg0: i32) -> (i32, i32) {
    %c0_i32 = arith.constant 0 : i32
    %c0_i32_0 = arith.constant 0 : i32
    %c0_i32_1 = arith.constant 0 : i32
    return %c0_i32, %c0_i32_0 : i32, i32
  }
  func.func @transform_4(%arg0: i32) -> (i32, i32) {
    %c0_i32 = arith.constant 0 : i32
    %c0_i32_0 = arith.constant 0 : i32
    %c0_i32_1 = arith.constant 0 : i32
    return %c0_i32, %c0_i32_0 : i32, i32
  }
  func.func @transform_5(%arg0: i32) -> (i32, i32) {
    %c0_i32 = arith.constant 0 : i32
    %c0_i32_0 = arith.constant 0 : i32
    %c0_i32_1 = arith.constant 0 : i32
    return %c0_i32, %c0_i32_0 : i32, i32
  }
}

</mosaic_0001>

<llo_original>
// kernel: tpu_custom_call.1
$region0: #{tpu_custom_call.1}
  #allocation0 [shape = 'u32[]', space=smem, size = 0x4, offset = 0x4, fixed_abs, tag = 'smem constant byte address 0x4 - core index']
  #allocation1 [shape = 'u32[144,128]{1,0:T(1,128)}', space=vmem, size = 0x12000, scoped, tag = 'internal scratch']
  %s0 = inlined_call_operand.vmem [shape: f32[32,32], index: 0, kind: input, shape index: {}]
  %s1 = inlined_call_operand.vmem [shape: bf16[32,128], index: 1, kind: input, shape index: {}]
  %s2 = inlined_call_operand.vmem [shape: f32[32,32], index: 2, kind: input, shape index: {}]
  %s3 = inlined_call_operand.hbm [shape: f32[32,34], index: 3, kind: input, shape index: {}]
  %s4 = inlined_call_operand.vmem [shape: bf16[128,32], index: 4, kind: input, shape index: {}]
  %s5 = inlined_call_operand.hbm [shape: f32[32,32], index: 5, kind: output, shape index: {}]
  %s6 = sld [smem:[#allocation0]]
  $region34: #{tpu_custom_call.1} parent=0
    _
  %s8 = ssub.s32 1, %s6
  %s9 = scalar_select 0, %s8, %s6
  $region1: #{tpu_custom_call.1} parent=0
    #allocation2 [shape = 'u8[16384]{0}', space=vmem, size = 0x4000, scoped, tag = 'input window, operand 3, single buffered']
    #allocation3 [shape = 's32[1]{0}', space=sflag, size = 0x4, scoped, tag = 'scoped memory for tpu_custom_call.1']
    #allocation4 [shape = 's32[1]{0}', space=sflag, size = 0x4, scoped, tag = 'scoped memory for tpu_custom_call.1']
    #allocation5 [shape = 'u8[16384]{0}', space=vmem, size = 0x4000, scoped, tag = 'output window, operand 0, single buffered']
    %10 = vsyncpa [#allocation3], 0
    %11 = vsyncpa [#allocation4], 0
    // Predicated region
    $region2: #{tpu_custom_call.1} parent=1 // pred_check
      _
    $region3: #{tpu_custom_call.1} parent=1 // pred_check_branch
      %13 = sbr.rel (0) target = $region5
    $region4: #{tpu_custom_call.1} parent=1 // pred_region
      _
    $region5: #{tpu_custom_call.1} parent=1 // pred_fallthru
      _
    // Predicated region
    $region6: #{tpu_custom_call.1} parent=1 // pred_check
      _
    $region7: #{tpu_custom_call.1} parent=1 // pred_check_branch
      %15 = sbr.rel (0) target = $region9
    $region8: #{tpu_custom_call.1} parent=1 // pred_region
      _
    $region9: #{tpu_custom_call.1} parent=1 // pred_fallthru
      _
    // Predicated region
    $region10: #{tpu_custom_call.1} parent=1 // pred_check
      _
    $region11: #{tpu_custom_call.1} parent=1 // pred_check_branch
      %17 = sbr.rel (0) target = $region13
    $region12: #{tpu_custom_call.1} parent=1 // pred_region
      _
    $region13: #{tpu_custom_call.1} parent=1 // pred_fallthru
      _
    // Predicated region
    $region14: #{tpu_custom_call.1} parent=1 // pred_check
      _
    $region15: #{tpu_custom_call.1} parent=1 // pred_check_branch
      %19 = sbr.rel (0) target = $region17
    $region16: #{tpu_custom_call.1} parent=1 // pred_region
      %s21 = ssub.s32 512, 512
      %22 = vsyncadd [#allocation3], %s21
      %s23 = sshll.u32 [#allocation2], 4
      %s24 = int_to_ptr.vmem [resolvable:$true] %s23
      %29 = dma.hbm_to_vmem [thread:$0]  %s3, 512, %s24, [#allocation3], 128, 128, 8
    $region17: #{tpu_custom_call.1} parent=1 // pred_fallthru
      _
    // Predicated region
    $region18: #{tpu_custom_call.1} parent=1 // pred_check
      _
    $region19: #{tpu_custom_call.1} parent=1 // pred_check_branch
      %31 = sbr.rel (0) target = $region21
    $region20: #{tpu_custom_call.1} parent=1 // pred_region
      _
    $region21: #{tpu_custom_call.1} parent=1 // pred_fallthru
      _
    // Predicated region
    $region22: #{tpu_custom_call.1} parent=1 // pred_check
      _
    $region23: #{tpu_custom_call.1} parent=1 // pred_check_branch
      %33 = sbr.rel (0) target = $region25
    $region24: #{tpu_custom_call.1} parent=1 // pred_region
      %34 = dma.done [#allocation3], 512
    $region25: #{tpu_custom_call.1} parent=1 // pred_fallthru
      _
    %v36 = vld [vmem:[%s0] sm:$0xff]
    %v37 = vld [vmem:[%s0 + $0x8] sm:$0xff]
    %v38 = vld [vmem:[%s0 + $0x10] sm:$0xff]
    %v39 = vld [vmem:[%s0 + $0x18] sm:$0xff]
    %v40 = vld [vmem:[#allocation2] sm:$0xff]
    %v41 = vld [vmem:[#allocation2 + $0x8] sm:$0xff]
    %v42 = vld [vmem:[#allocation2 + $0x10] sm:$0xff]
    %v43 = vld [vmem:[#allocation2 + $0x18] sm:$0xff]
    %vm44 = vcmask 261120
    %v46 = vsel %vm44, %v36, 0
    %v49 = vsel %vm44, %v37, 0
    %v52 = vsel %vm44, %v38, 0
    %v55 = vsel %vm44, %v39, 0
    %57 = vmatprep.subr.mxu0 0.0
    %58 = vmatpush1.msra.mxu0 %v40
    %59 = vmatprep.subr.mxu0 0.0
    %60 = vmatpush1.msra.mxu0 %v41
    %61 = vmatprep.subr.mxu0 0.0
    %62 = vmatpush1.msra.mxu0 %v42
    %63 = vmatprep.subr.mxu0 0.0
    %64 = vmatpush1.msra.mxu0 %v43
    %65 = vmatprep.subr.mxu0 0.0
    %66 = vmatpush1.msra.mxu0 0.0
    %67 = vmatprep.subr.mxu0 0.0
    %68 = vmatpush1.msra.mxu0 0.0
    %69 = vmatprep.subr.mxu0 0.0
    %70 = vmatpush1.msra.mxu0 0.0
    %71 = vmatprep.subr.mxu0 0.0
    %72 = vmatpush1.msra.mxu0 0.0
    %73 = vmatprep.subr.mxu0 0.0
    %74 = vmatpush1.msra.mxu0 0.0
    %75 = vmatprep.subr.mxu0 0.0
    %76 = vmatpush1.msra.mxu0 0.0
    %77 = vmatprep.subr.mxu0 0.0
    %78 = vmatpush1.msra.mxu0 0.0
    %79 = vmatprep.subr.mxu0 0.0
    %80 = vmatpush1.msra.mxu0 0.0
    %81 = vmatprep.subr.mxu0 0.0
    %82 = vmatpush1.msra.mxu0 0.0
    %83 = vmatprep.subr.mxu0 0.0
    %84 = vmatpush1.msra.mxu0 0.0
    %85 = vmatprep.subr.mxu0 0.0
    %86 = vmatpush1.msra.mxu0 0.0
    %87 = vmatprep.subr.mxu0 0.0
    %88 = vmatpush1.msra.mxu0 0.0
    %89 = vmatprep.subr.mxu0 0.0
    %90 = vmatpush1.msra.mxu0 0.0
    %91 = vmatprep.subr.mxu0 0.0
    %92 = vmatpush1.msra.mxu0 0.0
    %93 = vmatprep.subr.mxu0 0.0
    %94 = vmatpush1.msra.mxu0 0.0
    %95 = vmatprep.subr.mxu0 0.0
    %96 = vmatpush1.msra.mxu0 0.0
    %97 = vmatprep.subr.mxu0 0.0
    %98 = vmatpush1.msra.mxu0 0.0
    %99 = vmatprep.subr.mxu0 0.0
    %100 = vmatpush1.msra.mxu0 0.0
    %101 = vmatprep.subr.mxu0 0.0
    %102 = vmatpush1.msra.mxu0 0.0
    %103 = vmatprep.subr.mxu0 0.0
    %104 = vmatpush1.msra.mxu0 0.0
    %105 = vmatprep.subr.mxu0 0.0
    %106 = vmatpush1.msra.mxu0 0.0
    %107 = vmatprep.subr.mxu0 0.0
    %108 = vmatpush1.msra.mxu0 0.0
    %109 = vmatprep.subr.mxu0 0.0
    %110 = vmatpush1.msra.mxu0 0.0
    %111 = vmatprep.subr.mxu0 0.0
    %112 = vmatpush1.msra.mxu0 0.0
    %113 = vmatprep.subr.mxu0 0.0
    %114 = vmatpush1.msra.mxu0 0.0
    %115 = vmatprep.subr.mxu0 0.0
    %116 = vmatpush1.msra.mxu0 0.0
    %117 = vmatprep.subr.mxu0 0.0
    %118 = vmatpush1.msra.mxu0 0.0
    %119 = vmatprep.subr.mxu0 0.0
    %120 = vmatpush1.msra.mxu0 0.0
    %121 = vmatprep.mubr.f32.mxu0 0.0
    %122 = vmatmul.mubr.f32.gmra.mrb[0].mxu0 %v46
    %v123 = vpop.f32.mrb[0].mxu0
    %v124 = vadd.f32 0.0, %v123
    %v125 = vpop.f32.mrb[0].mxu0
    %126 = vmatprep.mubr.f32.mxu0 0.0
    %127 = vmatmul.mubr.f32.gmra.mrb[0].mxu0 %v49
    %v128 = vpop.f32.mrb[0].mxu0
    %v129 = vadd.f32 0.0, %v128
    %v130 = vpop.f32.mrb[0].mxu0
    %131 = vmatprep.mubr.f32.mxu0 0.0
    %132 = vmatmul.mubr.f32.gmra.mrb[0].mxu0 %v52
    %v133 = vpop.f32.mrb[0].mxu0
    %v134 = vadd.f32 0.0, %v133
    %v135 = vpop.f32.mrb[0].mxu0
    %136 = vmatprep.mubr.f32.mxu0 0.0
    %137 = vmatmul.mubr.f32.gmra.mrb[0].mxu0 %v55
    %v138 = vpop.f32.mrb[0].mxu0
    %v139 = vadd.f32 0.0, %v138
    %v140 = vpop.f32.mrb[0].mxu0
    %141 = vdwg.mxu0
    %v142 = vld [vmem:[%s1] sm:$0xf]
    %v143 = vld [vmem:[%s1 + $0x4] sm:$0xf]
    %v144 = vld [vmem:[%s1 + $0x8] sm:$0xf]
    %v145 = vld [vmem:[%s1 + $0xc] sm:$0xf]
    %v146 = vld [vmem:[%s4] sm:$0xf]
    %v147 = vld [vmem:[%s4 + $0x4] sm:$0xf]
    %v148 = vld [vmem:[%s4 + $0x8] sm:$0xf]
    %v149 = vld [vmem:[%s4 + $0xc] sm:$0xf]
    %v150 = vld [vmem:[%s4 + $0x10] sm:$0xf]
    %v151 = vld [vmem:[%s4 + $0x14] sm:$0xf]
    %v152 = vld [vmem:[%s4 + $0x18] sm:$0xf]
    %v153 = vld [vmem:[%s4 + $0x1c] sm:$0xf]
    %v154 = vld [vmem:[%s4 + $0x20] sm:$0xf]
    %v155 = vld [vmem:[%s4 + $0x24] sm:$0xf]
    %v156 = vld [vmem:[%s4 + $0x28] sm:$0xf]
    %v157 = vld [vmem:[%s4 + $0x2c] sm:$0xf]
    %v158 = vld [vmem:[%s4 + $0x30] sm:$0xf]
    %v159 = vld [vmem:[%s4 + $0x34] sm:$0xf]
    %v160 = vld [vmem:[%s4 + $0x38] sm:$0xf]
    %v161 = vld [vmem:[%s4 + $0x3c] sm:$0xf]
    %v166 = vunpack.c.l.b16 %v142
    %v167 = vunpack.c.l.b16 %v143
    %v168 = vunpack.c.l.b16 %v144
    %v169 = vunpack.c.l.b16 %v145
    %v170 = vpack.c.b16 %v167, %v166
    %v171 = vpack.c.b16 %v169, %v168
    %v190 = vunpack.c.l.b16 %v146
    %v191 = vunpack.c.l.b16 %v147
    %v192 = vunpack.c.l.b16 %v148
    %v193 = vunpack.c.l.b16 %v149
    %v194 = vunpack.c.l.b16 %v150
    %v195 = vunpack.c.l.b16 %v151
    %v196 = vunpack.c.l.b16 %v152
    %v197 = vunpack.c.l.b16 %v153
    %v198 = vunpack.c.l.b16 %v154
    %v199 = vunpack.c.l.b16 %v155
    %v200 = vunpack.c.l.b16 %v156
    %v201 = vunpack.c.l.b16 %v157
    %v202 = vunpack.c.l.b16 %v158
    %v203 = vunpack.c.l.b16 %v159
    %v204 = vunpack.c.l.b16 %v160
    %v205 = vunpack.c.l.b16 %v161
    %v206 = vpack.c.b16 %v191, %v190
    %v207 = vpack.c.b16 %v193, %v192
    %v208 = vpack.c.b16 %v195, %v194
    %v209 = vpack.c.b16 %v197, %v196
    %v210 = vpack.c.b16 %v199, %v198
    %v211 = vpack.c.b16 %v201, %v200
    %v212 = vpack.c.b16 %v203, %v202
    %v213 = vpack.c.b16 %v205, %v204
    %222 = vmatprep.subr.bf16.mxu0 0
    %223 = vmatpush1.bf16.msra.mxu0 %v206
    %224 = vmatprep.subr.bf16.mxu0 0
    %225 = vmatpush1.bf16.msra.mxu0 %v207
    %226 = vmatprep.subr.bf16.mxu0 0
    %227 = vmatpush1.bf16.msra.mxu0 %v208
    %228 = vmatprep.subr.bf16.mxu0 0
    %229 = vmatpush1.bf16.msra.mxu0 %v209
    %230 = vmatprep.subr.bf16.mxu0 0
    %231 = vmatpush1.bf16.msra.mxu0 %v210
    %232 = vmatprep.subr.bf16.mxu0 0
    %233 = vmatpush1.bf16.msra.mxu0 %v211
    %234 = vmatprep.subr.bf16.mxu0 0
    %235 = vmatpush1.bf16.msra.mxu0 %v212
    %236 = vmatprep.subr.bf16.mxu0 0
    %237 = vmatpush1.bf16.msra.mxu0 %v213
    %238 = vmatprep.subr.bf16.mxu0 0
    %239 = vmatpush1.bf16.msra.mxu0 0
    %240 = vmatprep.subr.bf16.mxu0 0
    %241 = vmatpush1.bf16.msra.mxu0 0
    %242 = vmatprep.subr.bf16.mxu0 0
    %243 = vmatpush1.bf16.msra.mxu0 0
    %244 = vmatprep.subr.bf16.mxu0 0
    %245 = vmatpush1.bf16.msra.mxu0 0
    %246 = vmatprep.subr.bf16.mxu0 0
    %247 = vmatpush1.bf16.msra.mxu0 0
    %248 = vmatprep.subr.bf16.mxu0 0
    %249 = vmatpush1.bf16.msra.mxu0 0
    %250 = vmatprep.subr.bf16.mxu0 0
    %251 = vmatpush1.bf16.msra.mxu0 0
    %252 = vmatprep.subr.bf16.mxu0 0
    %253 = vmatpush1.bf16.msra.mxu0 0
    %254 = vmatprep.mubr.bf16.mxu0 0
    %255 = vmatmul.mubr.bf16.gmra.mrb[0].mxu0 %v170
    %v256 = vpop.f32.mrb[0].mxu0
    %v257 = vadd.f32 0.0, %v256
    %v258 = vpop.f32.mrb[0].mxu0
    %v259 = vpop.f32.mrb[0].mxu0
    %v260 = vadd.f32 0.0, %v259
    %v261 = vpop.f32.mrb[0].mxu0
    %262 = vmatprep.mubr.bf16.mxu0 0
    %263 = vmatmul.mubr.bf16.gmra.mrb[0].mxu0 %v171
    %v264 = vpop.f32.mrb[0].mxu0
    %v265 = vadd.f32 0.0, %v264
    %v266 = vpop.f32.mrb[0].mxu0
    %v267 = vpop.f32.mrb[0].mxu0
    %v268 = vadd.f32 0.0, %v267
    %v269 = vpop.f32.mrb[0].mxu0
    %270 = vdwg.mxu0
    %272 = vset.pattern.permute.xlu0 33
    %273 = vperm.xlu0 %272, %v124
    %v274 = vpop.permute.xlu0 %273
    %277 = vset.pattern.permute.xlu0 33
    %278 = vperm.xlu0 %277, %v129
    %v279 = vpop.permute.xlu0 %278
    %282 = vset.pattern.permute.xlu0 33
    %283 = vperm.xlu0 %282, %v134
    %v284 = vpop.permute.xlu0 %283
    %287 = vset.pattern.permute.xlu0 33
    %288 = vperm.xlu0 %287, %v139
    %v289 = vpop.permute.xlu0 %288
    %291 = vset.pattern.permute.xlu0 32
    %292 = vperm.xlu0 %291, %v124
    %v293 = vpop.permute.xlu0 %292
    %294 = vset.pattern.permute.xlu0 32
    %295 = vperm.xlu0 %294, %v129
    %v296 = vpop.permute.xlu0 %295
    %297 = vset.pattern.permute.xlu0 32
    %298 = vperm.xlu0 %297, %v134
    %v299 = vpop.permute.xlu0 %298
    %300 = vset.pattern.permute.xlu0 32
    %301 = vperm.xlu0 %300, %v139
    %v302 = vpop.permute.xlu0 %301
    %v303 = vlaneseq
    %v304 = vand.u32 %v303, 127
    %v305 = vlaneseq
    %v306 = vshrl.u32 %v305, 7
    %v307 = vsub.s32 %v304, %v306
    %v308 = vrot.slane %v293, %v307
    %v309 = vadd.s32 %v304, 4294967288
    %v310 = vlaneseq
    %v311 = vshrl.u32 %v310, 7
    %v312 = vsub.s32 %v309, %v311
    %v313 = vrot.slane %v296, %v312
    %vm314 = vcmask 130112
    %v315 = vsel %vm314, %v313, %v308
    %v316 = vadd.s32 %v304, 4294967280
    %v317 = vlaneseq
    %v318 = vshrl.u32 %v317, 7
    %v319 = vsub.s32 %v316, %v318
    %v320 = vrot.slane %v299, %v319
    %vm321 = vcmask 195712
    %v322 = vsel %vm321, %v320, %v315
    %v323 = vadd.s32 %v304, 4294967272
    %v324 = vlaneseq
    %v325 = vshrl.u32 %v324, 7
    %v326 = vsub.s32 %v323, %v325
    %v327 = vrot.slane %v302, %v326
    %vm328 = vcmask 261312
    %v329 = vsel %vm328, %v327, %v322
    %vm330 = vcmask 1042434
    %v331 = vsel %vm330, %v329, %v329
    %vm332 = vcmask 1043459
    %v333 = vsel %vm332, %v329, %v331
    %vm334 = vcmask 1044484
    %v335 = vsel %vm334, %v329, %v333
    %vm336 = vcmask 1045509
    %v337 = vsel %vm336, %v329, %v335
    %vm338 = vcmask 1046534
    %v339 = vsel %vm338, %v329, %v337
    %vm340 = vcmask 1047559
    %v341 = vsel %vm340, %v329, %v339
    %v343 = vadd.f32 %v274, %v341
    %v344 = vadd.f32 %v279, %v341
    %v345 = vadd.f32 %v284, %v341
    %v346 = vadd.f32 %v289, %v341
    %v347 = vadd.f32 %v343, %v257
    %v348 = vadd.f32 %v344, %v260
    %v349 = vadd.f32 %v345, %v265
    %v350 = vadd.f32 %v346, %v268
    %vm351 = vcmp.ge.f32.partialorder %v347, 0.0
    %vm352 = vcmp.ge.f32.partialorder %v348, 0.0
    %vm353 = vcmp.ge.f32.partialorder %v349, 0.0
    %vm354 = vcmp.ge.f32.partialorder %v350, 0.0
    %v355 = vmul.f32 %v347, 0.01
    %v356 = vmul.f32 %v348, 0.01
    %v357 = vmul.f32 %v349, 0.01
    %v358 = vmul.f32 %v350, 0.01
    %v359 = vsel %vm351, %v347, %v355
    %v360 = vsel %vm352, %v348, %v356
    %v361 = vsel %vm353, %v349, %v357
    %v362 = vsel %vm354, %v350, %v358
    %v363 = vld [vmem:[%s2] sm:$0xff]
    %v364 = vld [vmem:[%s2 + $0x8] sm:$0xff]
    %v365 = vld [vmem:[%s2 + $0x10] sm:$0xff]
    %v366 = vld [vmem:[%s2 + $0x18] sm:$0xff]
    %vm367 = vcmp.gt.f32.partialorder %v363, 0.0
    %vm368 = vcmp.gt.f32.partialorder %v364, 0.0
    %vm369 = vcmp.gt.f32.partialorder %v365, 0.0
    %vm370 = vcmp.gt.f32.partialorder %v366, 0.0
    %v371 = vsel %vm367, %v359, -1e+30
    %v372 = vsel %vm368, %v360, -1e+30
    %v373 = vsel %vm369, %v361, -1e+30
    %v374 = vsel %vm370, %v362, -1e+30
    %v375 = vsel %vm44, %v371, -inf
    %376 = vmax.xlane.f32.xlu0 %v375
    %v377 = vpop.xlane.xlu0 %376
    %v378 = vsel %vm44, %v372, -inf
    %379 = vmax.xlane.f32.xlu0 %v378
    %v380 = vpop.xlane.xlu0 %379
    %v381 = vsel %vm44, %v373, -inf
    %382 = vmax.xlane.f32.xlu0 %v381
    %v383 = vpop.xlane.xlu0 %382
    %v384 = vsel %vm44, %v374, -inf
    %385 = vmax.xlane.f32.xlu0 %v384
    %v386 = vpop.xlane.xlu0 %385
    %v387 = vsub.f32 %v371, %v377
    %v388 = vsub.f32 %v372, %v380
    %v389 = vsub.f32 %v373, %v383
    %v390 = vsub.f32 %v374, %v386
    %v391 = vmul.f32 %v387, 1.442695
    %v392 = vpow.pop %v391
    %v393 = vmul.f32 %v388, 1.442695
    %v394 = vpow.pop %v393
    %v395 = vmul.f32 %v389, 1.442695
    %v396 = vpow.pop %v395
    %v397 = vmul.f32 %v390, 1.442695
    %v398 = vpow.pop %v397
    %v399 = vsel %vm367, %v392, 0.0
    %v400 = vsel %vm368, %v394, 0.0
    %v401 = vsel %vm369, %v396, 0.0
    %v402 = vsel %vm370, %v398, 0.0
    %v403 = vsel %vm44, %v399, 0.0
    %404 = vadd.xlane.f32.xlu0 %v403
    %v405 = vpop.xlane.xlu0 %404
    %v406 = vsel %vm44, %v400, 0.0
    %407 = vadd.xlane.f32.xlu0 %v406
    %v408 = vpop.xlane.xlu0 %407
    %v409 = vsel %vm44, %v401, 0.0
    %410 = vadd.xlane.f32.xlu0 %v409
    %v411 = vpop.xlane.xlu0 %410
    %v412 = vsel %vm44, %v402, 0.0
    %413 = vadd.xlane.f32.xlu0 %v412
    %v414 = vpop.xlane.xlu0 %413
    %v415 = vmax.f32 %v405, 1e-20
    %v416 = vmax.f32 %v408, 1e-20
    %v417 = vmax.f32 %v411, 1e-20
    %v418 = vmax.f32 %v414, 1e-20
    %v419 = vrcp.pop %v415
    %v420 = vrcp.pop %v416
    %v421 = vrcp.pop %v417
    %v422 = vrcp.pop %v418
    %v423 = vmul.f32 %v399, %v419
    %v424 = vmul.f32 %v400, %v420
    %v425 = vmul.f32 %v401, %v421
    %v426 = vmul.f32 %v402, %v422
    %v428 = vsel %vm44, %v423, 0
    %v431 = vsel %vm44, %v424, 0
    %v434 = vsel %vm44, %v425, 0
    %v437 = vsel %vm44, %v426, 0
    %439 = vmatprep.subr.mxu0 0.0
    %440 = vmatpush1.msra.mxu0 %v124
    %441 = vmatprep.subr.mxu0 0.0
    %442 = vmatpush1.msra.mxu0 %v129
    %443 = vmatprep.subr.mxu0 0.0
    %444 = vmatpush1.msra.mxu0 %v134
    %445 = vmatprep.subr.mxu0 0.0
    %446 = vmatpush1.msra.mxu0 %v139
    %447 = vmatprep.subr.mxu0 0.0
    %448 = vmatpush1.msra.mxu0 0.0
    %449 = vmatprep.subr.mxu0 0.0
    %450 = vmatpush1.msra.mxu0 0.0
    %451 = vmatprep.subr.mxu0 0.0
    %452 = vmatpush1.msra.mxu0 0.0
    %453 = vmatprep.subr.mxu0 0.0
    %454 = vmatpush1.msra.mxu0 0.0
    %455 = vmatprep.subr.mxu0 0.0
    %456 = vmatpush1.msra.mxu0 0.0
    %457 = vmatprep.subr.mxu0 0.0
    %458 = vmatpush1.msra.mxu0 0.0
    %459 = vmatprep.subr.mxu0 0.0
    %460 = vmatpush1.msra.mxu0 0.0
    %461 = vmatprep.subr.mxu0 0.0
    %462 = vmatpush1.msra.mxu0 0.0
    %463 = vmatprep.subr.mxu0 0.0
    %464 = vmatpush1.msra.mxu0 0.0
    %465 = vmatprep.subr.mxu0 0.0
    %466 = vmatpush1.msra.mxu0 0.0
    %467 = vmatprep.subr.mxu0 0.0
    %468 = vmatpush1.msra.mxu0 0.0
    %469 = vmatprep.subr.mxu0 0.0
    %470 = vmatpush1.msra.mxu0 0.0
    %471 = vmatprep.subr.mxu0 0.0
    %472 = vmatpush1.msra.mxu0 0.0
    %473 = vmatprep.subr.mxu0 0.0
    %474 = vmatpush1.msra.mxu0 0.0
    %475 = vmatprep.subr.mxu0 0.0
    %476 = vmatpush1.msra.mxu0 0.0
    %477 = vmatprep.subr.mxu0 0.0
    %478 = vmatpush1.msra.mxu0 0.0
    %479 = vmatprep.subr.mxu0 0.0
    %480 = vmatpush1.msra.mxu0 0.0
    %481 = vmatprep.subr.mxu0 0.0
    %482 = vmatpush1.msra.mxu0 0.0
    %483 = vmatprep.subr.mxu0 0.0
    %484 = vmatpush1.msra.mxu0 0.0
    %485 = vmatprep.subr.mxu0 0.0
    %486 = vmatpush1.msra.mxu0 0.0
    %487 = vmatprep.subr.mxu0 0.0
    %488 = vmatpush1.msra.mxu0 0.0
    %489 = vmatprep.subr.mxu0 0.0
    %490 = vmatpush1.msra.mxu0 0.0
    %491 = vmatprep.subr.mxu0 0.0
    %492 = vmatpush1.msra.mxu0 0.0
    %493 = vmatprep.subr.mxu0 0.0
    %494 = vmatpush1.msra.mxu0 0.0
    %495 = vmatprep.subr.mxu0 0.0
    %496 = vmatpush1.msra.mxu0 0.0
    %497 = vmatprep.subr.mxu0 0.0
    %498 = vmatpush1.msra.mxu0 0.0
    %499 = vmatprep.subr.mxu0 0.0
    %500 = vmatpush1.msra.mxu0 0.0
    %501 = vmatprep.subr.mxu0 0.0
    %502 = vmatpush1.msra.mxu0 0.0
    %503 = vmatprep.mubr.f32.mxu0 0.0
    %504 = vmatmul.mubr.f32.gmra.mrb[0].mxu0 %v428
    %v505 = vpop.f32.mrb[0].mxu0
    %v506 = vadd.f32 0.0, %v505
    %v507 = vpop.f32.mrb[0].mxu0
    %508 = vmatprep.mubr.f32.mxu0 0.0
    %509 = vmatmul.mubr.f32.gmra.mrb[0].mxu0 %v431
    %v510 = vpop.f32.mrb[0].mxu0
    %v511 = vadd.f32 0.0, %v510
    %v512 = vpop.f32.mrb[0].mxu0
    %513 = vmatprep.mubr.f32.mxu0 0.0
    %514 = vmatmul.mubr.f32.gmra.mrb[0].mxu0 %v434
    %v515 = vpop.f32.mrb[0].mxu0
    %v516 = vadd.f32 0.0, %v515
    %v517 = vpop.f32.mrb[0].mxu0
    %518 = vmatprep.mubr.f32.mxu0 0.0
    %519 = vmatmul.mubr.f32.gmra.mrb[0].mxu0 %v437
    %v520 = vpop.f32.mrb[0].mxu0
    %v521 = vadd.f32 0.0, %v520
    %v522 = vpop.f32.mrb[0].mxu0
    %523 = vdwg.mxu0
    %524 = vst.msk [vmem:[#allocation5] sm:$0xff] %vm44, %v506
    %525 = vst.msk [vmem:[#allocation5 + $0x8] sm:$0xff] %vm44, %v511
    %526 = vst.msk [vmem:[#allocation5 + $0x10] sm:$0xff] %vm44, %v516
    %527 = vst.msk [vmem:[#allocation5 + $0x18] sm:$0xff] %vm44, %v521
    // Predicated region
    $region26: #{tpu_custom_call.1} parent=1 // pred_check
      _
    $region27: #{tpu_custom_call.1} parent=1 // pred_check_branch
      %529 = sbr.rel (0) target = $region29
    $region28: #{tpu_custom_call.1} parent=1 // pred_region
      %s531 = ssub.s32 512, 512
      %532 = vsyncadd [#allocation4], %s531
      %s533 = sshll.u32 [#allocation5], 4
      %s534 = int_to_ptr.vmem [resolvable:$true] %s533
      %539 = dma.vmem_to_hbm [thread:$0]  %s534, 512, %s5, [#allocation4], 128, 128, 8
    $region29: #{tpu_custom_call.1} parent=1 // pred_fallthru
      _
    // Predicated region
    $region30: #{tpu_custom_call.1} parent=1 // pred_check
      _
    $region31: #{tpu_custom_call.1} parent=1 // pred_check_branch
      %541 = sbr.rel (0) target = $region33
    $region32: #{tpu_custom_call.1} parent=1 // pred_region
      %542 = dma.done [#allocation4], 512
    $region33: #{tpu_custom_call.1} parent=1 // pred_fallthru
      _
    %543 = vsyncpa [#allocation3], 1
    %544 = vsyncpa [#allocation4], 1

</llo_original>
